<compile_context>
chip_gen: v7x
topology: tpu7x:2x2x1
jax: 0.10.0
libtpu: 0.0.40
codegen_flags: <defaults>
</compile_context>

<pallas_src>
import functools

import jax
import jax.numpy as jnp
from jax import lax
from jax.experimental import pallas as pl
from jax.experimental.pallas import tpu as pltpu

_STATIC_UNROLL_MAX = 16      # fully unroll the time loop up to this many steps


def _round_up(x, m):
    return ((x + m - 1) // m) * m


def _izhikevich_kernel(a, b, c, d, num_steps, I_ref, v_ref, u_ref,
                       v_out_ref, u_out_ref, spike_ref):
    """num_steps fused Izhikevich updates on one (tile_n, tile_d) VMEM block.

    Spike history is bit-packed LSB-first, 8 steps per uint8 plane:
      bit (t % 8) of spike_ref[t // 8]  ==  (v >= 30) at entry of step t.
    """
    I = I_ref[...]
    v = v_ref[...]
    u = u_ref[...]

    def one_step(v, u):
        spike = v >= 30.0
        v = jnp.where(spike, c, v)
        u = jnp.where(spike, u + d, u)
        # Same association order as the PyTorch reference (keeps the spike
        # decision bit-compatible across long fused runs).
        v = v + 0.04 * (v * v) + 5.0 * v + 140.0 - u + I
        u = u + a * (b * v - u)      # recovery uses the already-updated v
        return v, u, spike

    def run_group(v, u, n_sub):
        # n_sub (<= 8) statically unrolled steps, packed into one uint8 plane.
        bits = None
        for s in range(n_sub):
            v, u, spike = one_step(v, u)
            sbit = spike.astype(jnp.int32) << s
            bits = sbit if bits is None else (bits | sbit)
        return v, u, bits.astype(jnp.uint8)

    n_full = num_steps // 8
    tail = num_steps % 8

    if num_steps <= _STATIC_UNROLL_MAX:
        # Short runs: fully static unroll (best VLIW packing, tiny code size).
        for g in range(n_full):
            v, u, byte = run_group(v, u, 8)
            spike_ref[g] = byte
    else:
        # Long runs: fori_loop over 8-step groups bounds code size / compile
        # time; state (v, u) stays on-chip as the loop carry.
        def body(g, carry):
            vv, uu = carry
            vv, uu, byte = run_group(vv, uu, 8)
            spike_ref[g] = byte
            return vv, uu
        v, u = lax.fori_loop(0, n_full, body, (v, u))

    if tail:
        v, u, byte = run_group(v, u, tail)
        spike_ref[n_full] = byte

    v_out_ref[...] = v
    u_out_ref[...] = u


def _tpu_vmem_budget():
    """(physical VMEM bytes, scoped budget used for tile sizing & vmem_limit)."""
    phys = 64 << 20                        # conservative default (v7x per-core)
    try:
        phys = int(pltpu.get_tpu_info().vmem_capacity_bytes)
    except Exception:
        pass
    budget = min((phys * 3) // 4, 96 << 20)   # leave headroom below physical
    return phys, budget


def _target_row_blocks():
    """Grid-length target: >= 8 row blocks on v7x (2 TensorCores), >= 4 else."""
    try:
        kind = jax.devices()[0].device_kind.lower()
    except Exception:
        kind = ""
    return 8 if "v7" in kind else 4


def _choose_tiles(N, D, n_bytes, budget, target_blocks, min_block_bytes):
    """Pick (tile_n, tile_d).

    Steady-state VMEM per block element (double-buffered pipeline):
      3 f32 inputs*2 + 2 f32 outputs*2 + ~4 f32 body temporaries
      + n_bytes uint8 spike planes * 2  ==  56 + 2*n_bytes bytes.
    tile_n is a multiple of 32 and tile_d a multiple of 128 so the uint8
    spike planes hit the native (32, 128) int8 tiling (unmasked lane-dense
    stores).  Blocks stay >= min_block_bytes of f32 (grid overhead amortized)
    and we aim for >= target_blocks row blocks for pipeline fill / megacore
    sharding without shrinking below that floor.
    """
    per_elem = 56 + 2 * n_bytes

    # Lane (last-dim) tile: full width unless even 32 rows would blow VMEM.
    cap_d = max(128, (budget // (32 * per_elem)) // 128 * 128)
    tile_d = min(_round_up(D, 128), cap_d)

    # Row tile.
    cap_n = max(32, (budget // (tile_d * per_elem)) // 32 * 32)
    min_rows = _round_up(max(1, -(-min_block_bytes // (4 * tile_d))), 32)
    rows_for_target = max(32, (N // target_blocks) // 32 * 32)
    tile_n = min(cap_n, max(min_rows, rows_for_target))
    tile_n = max(32, min(tile_n, _round_up(N, 32)))
    tile_n = (tile_n // 32) * 32
    return tile_n, tile_d


def izhikevich_forward(I, v, u, *, a, b, c, d, num_steps=1,
                       min_block_bytes=512 << 10):
    """Run num_steps fused Izhikevich steps (the SAME I each step).

    Args:
      I, v, u: [N, D] float32 input current and membrane/recovery state.
    Returns:
      (v_new, u_new, spikes_packed) where spikes_packed is
      [ceil(num_steps/8), N, D] uint8; step t's spike indicator is bit (t % 8)
      of plane (t // 8).  Use unpack_spike_history() to expand to int8 planes.
    """
    N, D = I.shape
    num_steps = int(num_steps)
    n_bytes = -(-num_steps // 8)

    _, budget = _tpu_vmem_budget()
    tile_n, tile_d = _choose_tiles(N, D, n_bytes, budget,
                                   _target_row_blocks(), min_block_bytes)
    N_pad, D_pad = _round_up(N, tile_n), _round_up(D, tile_d)

    padded = (N_pad, D_pad) != (N, D)
    if padded:
        pad = ((0, N_pad - N), (0, D_pad - D))
        I = jnp.pad(I, pad)
        v = jnp.pad(v, pad, constant_values=-65.0)   # padded rows sliced off
        u = jnp.pad(u, pad)

    grid = (N_pad // tile_n, D_pad // tile_d)
    state_spec = pl.BlockSpec((tile_n, tile_d), lambda i, j: (i, j))
    spike_spec = pl.BlockSpec((n_bytes, tile_n, tile_d), lambda i, j: (0, i, j))

    kernel = functools.partial(_izhikevich_kernel,
                               float(a), float(b), float(c), float(d),
                               num_steps)

    v_new, u_new, spikes = pl.pallas_call(
        kernel,
        out_shape=(
            jax.ShapeDtypeStruct((N_pad, D_pad), jnp.float32),            # v
            jax.ShapeDtypeStruct((N_pad, D_pad), jnp.float32),            # u
            jax.ShapeDtypeStruct((n_bytes, N_pad, D_pad), jnp.uint8),     # spikes
        ),
        grid=grid,
        in_specs=[state_spec, state_spec, state_spec],
        out_specs=(state_spec, state_spec, spike_spec),
        # State update is naturally in-place: v -> v_new, u -> u_new.
        input_output_aliases={1: 0, 2: 1},
        compiler_params=pltpu.CompilerParams(
            dimension_semantics=("parallel", "parallel"),
            vmem_limit_bytes=int(budget)),
    )(I, v, u)

    if padded:
        v_new, u_new = v_new[:N, :D], u_new[:N, :D]
        spikes = spikes[:, :N, :D]
    return v_new, u_new, spikes


def unpack_spike_history(packed, num_steps):
    """[ceil(T/8), N, D] uint8 bit planes  ->  [T, N, D] int8 (0/1)."""
    planes = [((packed[t // 8] >> (t % 8)) & 1).astype(jnp.int8)
              for t in range(num_steps)]
    return jnp.stack(planes)


def izhikevich_ref(I, v, u, *, a, b, c, d):
    """Pure-JAX single-step reference (mirrors the PyTorch forward exactly)."""
    spike = v >= 30.0
    v = jnp.where(spike, c, v)
    u = jnp.where(spike, u + d, u)
    v_new = v + 0.04 * (v * v) + 5.0 * v + 140.0 - u + I
    u_new = u + a * (b * v_new - u)
    return v_new, u_new, spike.astype(jnp.int8)


if __name__ == "__main__":
    # Deterministic "regular spiking" Izhikevich parameters.
    a, b, c, d = 0.02, 0.2, -65.0, 8.0

    N, D = 200, 192            # exercises padding to (32, 128) multiples
    key = jax.random.PRNGKey(0)
    I = 10.0 * jax.random.normal(key, (N, D), dtype=jnp.float32)

    # Initial state exactly as in __init__: v = -65, u = b * v.
    v0 = jnp.full((N, D), -65.0, dtype=jnp.float32)
    u0 = jnp.full((N, D), b * -65.0, dtype=jnp.float32)

    # Small min_block_bytes so this tiny test problem still runs multi-block.
    for T in (1, 3, 20):       # covers static-unroll and fori_loop paths
        v, u, packed = izhikevich_forward(I, v0, u0, a=a, b=b, c=c, d=d,
                                          num_steps=T,
                                          min_block_bytes=32 << 10)
        v = jax.block_until_ready(v)
        spikes = unpack_spike_history(packed, T)

        v_r, u_r = v0, u0
        sp_r = []
        for _ in range(T):
            v_r, u_r, s_r = izhikevich_ref(I, v_r, u_r, a=a, b=b, c=c, d=d)
            sp_r.append(s_r)
        sp_r = jnp.stack(sp_r)

        assert jnp.allclose(v, v_r, rtol=1e-3, atol=1e-2), f"v mismatch T={T}"
        assert jnp.allclose(u, u_r, rtol=1e-3, atol=1e-2), f"u mismatch T={T}"
        assert jnp.array_equal(spikes, sp_r), f"spike history mismatch T={T}"

    print("KERNEL_OK")
</pallas_src>

<mosaic_0001>
module attributes {stable_mosaic.version = 11 : i64} {
  func.func @_izhikevich_kernel(%arg0: i32, %arg1: i32, %arg2: memref<32x256xf32, #tpu.memory_space<vmem>>, %arg3: memref<32x256xf32, #tpu.memory_space<vmem>>, %arg4: memref<32x256xf32, #tpu.memory_space<vmem>>, %arg5: memref<32x256xf32, #tpu.memory_space<vmem>>, %arg6: memref<32x256xf32, #tpu.memory_space<vmem>>, %arg7: memref<1x32x256xi8, #tpu.memory_space<vmem>>) attributes {dimension_semantics = [#tpu.dimension_semantics<parallel>, #tpu.dimension_semantics<parallel>], iteration_bounds = array<i64: 7, 1>, scalar_prefetch = 0 : i64, scratch_operands = 0 : i64, tpu.core_type = #tpu.core_type<tc>, window_params = [{transform_indices = @transform_0, window_bounds = array<i64: 32, 256>}, {transform_indices = @transform_1, window_bounds = array<i64: 32, 256>}, {transform_indices = @transform_2, window_bounds = array<i64: 32, 256>}, {transform_indices = @transform_3, window_bounds = array<i64: 32, 256>}, {transform_indices = @transform_4, window_bounds = array<i64: 32, 256>}, {transform_indices = @transform_5, window_bounds = array<i64: 1, 32, 256>}]} {
    %c0 = arith.constant 0 : index
    %c0_0 = arith.constant 0 : index
    %0 = vector.load %arg2[%c0, %c0_0] : memref<32x256xf32, #tpu.memory_space<vmem>>, vector<32x256xf32>
    %c0_1 = arith.constant 0 : index
    %c0_2 = arith.constant 0 : index
    %1 = vector.load %arg3[%c0_1, %c0_2] : memref<32x256xf32, #tpu.memory_space<vmem>>, vector<32x256xf32>
    %c0_3 = arith.constant 0 : index
    %c0_4 = arith.constant 0 : index
    %2 = vector.load %arg4[%c0_3, %c0_4] : memref<32x256xf32, #tpu.memory_space<vmem>>, vector<32x256xf32>
    %cst = arith.constant 3.000000e+01 : f32
    %3 = vector.broadcast %cst : f32 to vector<32x256xf32>
    %4 = arith.cmpf oge, %1, %3 : vector<32x256xf32>
    %cst_5 = arith.constant -6.500000e+01 : f32
    %5 = vector.broadcast %cst_5 : f32 to vector<32x256xf32>
    %6 = arith.select %4, %5, %1 : vector<32x256xi1>, vector<32x256xf32>
    %cst_6 = arith.constant 8.000000e+00 : f32
    %7 = vector.broadcast %cst_6 : f32 to vector<32x256xf32>
    %8 = arith.addf %2, %7 : vector<32x256xf32>
    %9 = arith.select %4, %8, %2 : vector<32x256xi1>, vector<32x256xf32>
    %10 = arith.mulf %6, %6 : vector<32x256xf32>
    %cst_7 = arith.constant 4.000000e-02 : f32
    %11 = vector.broadcast %cst_7 : f32 to vector<32x256xf32>
    %12 = arith.mulf %11, %10 : vector<32x256xf32>
    %13 = arith.addf %6, %12 : vector<32x256xf32>
    %cst_8 = arith.constant 5.000000e+00 : f32
    %14 = vector.broadcast %cst_8 : f32 to vector<32x256xf32>
    %15 = arith.mulf %14, %6 : vector<32x256xf32>
    %16 = arith.addf %13, %15 : vector<32x256xf32>
    %cst_9 = arith.constant 1.400000e+02 : f32
    %17 = vector.broadcast %cst_9 : f32 to vector<32x256xf32>
    %18 = arith.addf %16, %17 : vector<32x256xf32>
    %19 = arith.subf %18, %9 : vector<32x256xf32>
    %20 = arith.addf %19, %0 : vector<32x256xf32>
    %cst_10 = arith.constant 2.000000e-01 : f32
    %21 = vector.broadcast %cst_10 : f32 to vector<32x256xf32>
    %22 = arith.mulf %21, %20 : vector<32x256xf32>
    %23 = arith.subf %22, %9 : vector<32x256xf32>
    %cst_11 = arith.constant 2.000000e-02 : f32
    %24 = vector.broadcast %cst_11 : f32 to vector<32x256xf32>
    %25 = arith.mulf %24, %23 : vector<32x256xf32>
    %26 = arith.addf %9, %25 : vector<32x256xf32>
    %27 = arith.extui %4 : vector<32x256xi1> to vector<32x256xi32>
    %c0_i32 = arith.constant 0 : i32
    %28 = vector.broadcast %c0_i32 : i32 to vector<32x256xi32>
    %29 = arith.shli %27, %28 : vector<32x256xi32>
    %30 = arith.trunci %29 : vector<32x256xi32> to vector<32x256xi8>
    %c0_12 = arith.constant 0 : index
    %c0_13 = arith.constant 0 : index
    %c0_14 = arith.constant 0 : index
    %31 = vector.load %arg7[%c0_12, %c0_13, %c0_14] : memref<1x32x256xi8, #tpu.memory_space<vmem>>, vector<1x32x256xi8>
    %32 = vector.shape_cast %31 : vector<1x32x256xi8> to vector<32x256xi8>
    %33 = vector.shape_cast %30 : vector<32x256xi8> to vector<1x32x256xi8>
    tpu.vector_store %arg7[%c0_12, %c0_13, %c0_14], %33 {strides = array<i32>} : memref<1x32x256xi8, #tpu.memory_space<vmem>>, vector<1x32x256xi8>,
    %c0_15 = arith.constant 0 : index
    %c0_16 = arith.constant 0 : index
    %34 = vector.load %arg5[%c0_15, %c0_16] : memref<32x256xf32, #tpu.memory_space<vmem>>, vector<32x256xf32>
    tpu.vector_store %arg5[%c0_15, %c0_16], %20 {strides = array<i32>} : memref<32x256xf32, #tpu.memory_space<vmem>>, vector<32x256xf32>,
    %c0_17 = arith.constant 0 : index
    %c0_18 = arith.constant 0 : index
    %35 = vector.load %arg6[%c0_17, %c0_18] : memref<32x256xf32, #tpu.memory_space<vmem>>, vector<32x256xf32>
    tpu.vector_store %arg6[%c0_17, %c0_18], %26 {strides = array<i32>} : memref<32x256xf32, #tpu.memory_space<vmem>>, vector<32x256xf32>,
    return
  }
  func.func @transform_0(%arg0: i32, %arg1: i32) -> (i32, i32) {
    %c0_i32 = arith.constant 0 : i32
    return %arg0, %arg1 : i32, i32
  }
  func.func @transform_1(%arg0: i32, %arg1: i32) -> (i32, i32) {
    %c0_i32 = arith.constant 0 : i32
    return %arg0, %arg1 : i32, i32
  }
  func.func @transform_2(%arg0: i32, %arg1: i32) -> (i32, i32) {
    %c0_i32 = arith.constant 0 : i32
    return %arg0, %arg1 : i32, i32
  }
  func.func @transform_3(%arg0: i32, %arg1: i32) -> (i32, i32) {
    %c0_i32 = arith.constant 0 : i32
    return %arg0, %arg1 : i32, i32
  }
  func.func @transform_4(%arg0: i32, %arg1: i32) -> (i32, i32) {
    %c0_i32 = arith.constant 0 : i32
    return %arg0, %arg1 : i32, i32
  }
  func.func @transform_5(%arg0: i32, %arg1: i32) -> (i32, i32, i32) {
    %c0_i32 = arith.constant 0 : i32
    %c0_i32_0 = arith.constant 0 : i32
    return %c0_i32, %arg0, %arg1 : i32, i32, i32
  }
}

</mosaic_0001>

<llo_original>
// kernel: tpu_custom_call.1
$region0: #{tpu_custom_call.1}
  #allocation0 [shape = 'u32[]', space=smem, size = 0x4, offset = 0x4, fixed_abs, tag = 'smem constant byte address 0x4 - core index']
  #allocation1 [shape = 'u32[144,128]{1,0:T(1,128)}', space=vmem, size = 0x12000, scoped, tag = 'internal scratch']
  %s0 = inlined_call_operand.vmem [shape: f32[224,256], index: 0, kind: input, shape index: {}]
  %s1 = inlined_call_operand.hbm [shape: f32[224,256], index: 1, kind: input, shape index: {}, may-alias: {1,3}]
  %s2 = inlined_call_operand.hbm [shape: f32[224,256], index: 2, kind: input, shape index: {}, may-alias: {2,4}]
  %s3 = inlined_call_operand.hbm [shape: f32[224,256], index: 3, kind: output, shape index: {0}, may-alias: {1,3}]
  %s4 = inlined_call_operand.hbm [shape: f32[224,256], index: 4, kind: output, shape index: {1}, may-alias: {2,4}]
  %s5 = inlined_call_operand.hbm [shape: u8[1,224,256], index: 5, kind: output, shape index: {2}]
  %6 = xla_tuple %s3, %s4, %s5
  %s7 = sld [smem:[#allocation0]]
  $region69: #{tpu_custom_call.1} parent=0
    _
  %s9 = ssub.s32 1, %s7
  %s10 = scalar_select 0, %s9, %s7
  $region1: #{tpu_custom_call.1} parent=0
    #allocation2 [shape = 'u8[65536]{0}', space=vmem, size = 0x10000, scoped, tag = 'input window, operand 1']
    #allocation3 [shape = 's32[2]{0}', space=sflag, size = 0x8, scoped, tag = 'scoped memory for tpu_custom_call.1']
    #allocation4 [shape = 's32[2]{0}', space=sflag, size = 0x8, scoped, tag = 'scoped memory for tpu_custom_call.1']
    #allocation5 [shape = 'u8[65536]{0}', space=vmem, size = 0x10000, scoped, tag = 'input window, operand 2']
    #allocation6 [shape = 's32[2]{0}', space=sflag, size = 0x8, scoped, tag = 'scoped memory for tpu_custom_call.1']
    #allocation7 [shape = 'u8[65536]{0}', space=vmem, size = 0x10000, scoped, tag = 'output window, operand 0']
    #allocation8 [shape = 'u8[65536]{0}', space=vmem, size = 0x10000, scoped, tag = 'output window, operand 1']
    #allocation9 [shape = 's32[2]{0}', space=sflag, size = 0x8, scoped, tag = 'scoped memory for tpu_custom_call.1']
    #allocation10 [shape = 'u8[16384]{0}', space=vmem, size = 0x4000, scoped, tag = 'output window, operand 2']
    %11 = vsyncpa [#allocation3], 0
    %s12 = scalar_lea.sflag [#allocation3], 1
    %13 = vsyncpa %s12, 0
    %14 = vsyncpa [#allocation6], 0
    %s15 = scalar_lea.sflag [#allocation6], 1
    %16 = vsyncpa %s15, 0
    %17 = vsyncpa [#allocation4], 0
    %s18 = scalar_lea.sflag [#allocation4], 1
    %19 = vsyncpa %s18, 0
    %20 = vsyncpa [#allocation9], 0
    %s21 = scalar_lea.sflag [#allocation9], 1
    %22 = vsyncpa %s21, 0
    loop: start=0, step=1, limit=9
    $region2: #{tpu_custom_call.1} parent=1 // loop_pre_header
      _
    $region3: #{tpu_custom_call.1} parent=1 // loop_header
      %s24 = sphi 0, %s28
      %p25 = scmp.ge.s32.totalorder %s24, 9
      %s31 = sphi 0, %s43
      %s32 = sphi 0, %s39
      %s33 = sphi 0, %s31
      %s34 = sphi 0, %s32
      %s35 = sphi 0, %s33
      %s36 = sphi 0, %s34
      %s48 = sphi 0, %s50
      %s51 = sphi 0, %s48
      %s52 = sphi 0, %s51
      %s68 = sphi 0, %s52
      %s76 = sphi 0, %s78
      %s79 = sphi 0, %s76
      %s80 = sphi 0, %s79
      %s96 = sphi 0, %s80
      %s104 = sphi 0, %s106
      %s107 = sphi 0, %s104
      %s108 = sphi 0, %s107
      %s124 = sphi 0, %s108
      %s132 = sphi 0, %s134
      %s135 = sphi 0, %s132
      %s136 = sphi 0, %s135
      %s152 = sphi 0, %s136
      %s160 = sphi 0, %s162
      %s163 = sphi 0, %s160
      %s164 = sphi 0, %s163
      %s180 = sphi 0, %s164
      %s188 = sphi 0, %s190
      %s191 = sphi 0, %s188
      %s192 = sphi 0, %s191
      %s208 = sphi 0, %s192
    $region4: #{tpu_custom_call.1} parent=1 // loop_header_branch
      %27 = sbr.rel (%p25) target = $region8
    $region5: #{tpu_custom_call.1} parent=1 // loop_body
      %s29 = ssub.s32 %s24, 1
      %s30 = ssub.s32 %s24, 2
      %s37 = sadd.s32 1, %s32
      %p38 = scmp.ge.s32.totalorder %s37, 1
      %s39 = scalar_select %p38, 0, %s37
      %s40 = sadd.s32 1, %s31
      %s41 = scalar_select %p38, %s40, %s31
      %p42 = scmp.ge.s32.totalorder %s41, 7
      %s43 = scalar_select %p42, 0, %s41
      %s44 = ssub.s32 %s31, %s43
      %s45 = ssub.s32 %s32, %s39
      %s46 = sor.u32 %s44, %s45
      %p47 = scmp.eq.s32.totalorder %s46, 0
      %s49 = sadd.s32 %s48, 1
      %s50 = scalar_select %p47, %s48, %s49
      %p53 = pneg %p47
      %p54 = scmp.eq.s32.totalorder %s24, 6
      %p55 = por %p53, %p54
      %p56 = scmp.ne.s32.totalorder %s48, %s51
      %p57 = scmp.eq.s32.totalorder %s24, 0
      %p58 = por %p56, %p57
      %p59 = scmp.ne.s32.totalorder %s48, %s51
      %p60 = scmp.eq.s32.totalorder %s29, 6
      %p61 = por %p59, %p60
      %p62 = scmp.ne.s32.totalorder %s51, %s52
      %p63 = scmp.eq.s32.totalorder %s29, 0
      %p64 = por %p62, %p63
      %p65 = scmp.ne.s32.totalorder %s51, %s52
      %p66 = scmp.eq.s32.totalorder %s30, 6
      %p67 = por %p65, %p66
      %p69 = scmp.ne.s32.totalorder %s52, %s68
      %p70 = scmp.eq.s32.totalorder %s30, 0
      %p71 = por %p69, %p70
      %s72 = ssub.s32 %s31, %s43
      %s73 = ssub.s32 %s32, %s39
      %s74 = sor.u32 %s72, %s73
      %p75 = scmp.eq.s32.totalorder %s74, 0
      %s77 = sadd.s32 %s76, 1
      %s78 = scalar_select %p75, %s76, %s77
      %p81 = pneg %p75
      %p82 = scmp.eq.s32.totalorder %s24, 6
      %p83 = por %p81, %p82
      %p84 = scmp.ne.s32.totalorder %s76, %s79
      %p85 = scmp.eq.s32.totalorder %s24, 0
      %p86 = por %p84, %p85
      %p87 = scmp.ne.s32.totalorder %s76, %s79
      %p88 = scmp.eq.s32.totalorder %s29, 6
      %p89 = por %p87, %p88
      %p90 = scmp.ne.s32.totalorder %s79, %s80
      %p91 = scmp.eq.s32.totalorder %s29, 0
      %p92 = por %p90, %p91
      %p93 = scmp.ne.s32.totalorder %s79, %s80
      %p94 = scmp.eq.s32.totalorder %s30, 6
      %p95 = por %p93, %p94
      %p97 = scmp.ne.s32.totalorder %s80, %s96
      %p98 = scmp.eq.s32.totalorder %s30, 0
      %p99 = por %p97, %p98
      %s100 = ssub.s32 %s31, %s43
      %s101 = ssub.s32 %s32, %s39
      %s102 = sor.u32 %s100, %s101
      %p103 = scmp.eq.s32.totalorder %s102, 0
      %s105 = sadd.s32 %s104, 1
      %s106 = scalar_select %p103, %s104, %s105
      %p109 = pneg %p103
      %p110 = scmp.eq.s32.totalorder %s24, 6
      %p111 = por %p109, %p110
      %p112 = scmp.ne.s32.totalorder %s104, %s107
      %p113 = scmp.eq.s32.totalorder %s24, 0
      %p114 = por %p112, %p113
      %p115 = scmp.ne.s32.totalorder %s104, %s107
      %p116 = scmp.eq.s32.totalorder %s29, 6
      %p117 = por %p115, %p116
      %p118 = scmp.ne.s32.totalorder %s107, %s108
      %p119 = scmp.eq.s32.totalorder %s29, 0
      %p120 = por %p118, %p119
      %p121 = scmp.ne.s32.totalorder %s107, %s108
      %p122 = scmp.eq.s32.totalorder %s30, 6
      %p123 = por %p121, %p122
      %p125 = scmp.ne.s32.totalorder %s108, %s124
      %p126 = scmp.eq.s32.totalorder %s30, 0
      %p127 = por %p125, %p126
      %s128 = ssub.s32 %s31, %s43
      %s129 = ssub.s32 %s32, %s39
      %s130 = sor.u32 %s128, %s129
      %p131 = scmp.eq.s32.totalorder %s130, 0
      %s133 = sadd.s32 %s132, 1
      %s134 = scalar_select %p131, %s132, %s133
      %p137 = pneg %p131
      %p138 = scmp.eq.s32.totalorder %s24, 6
      %p139 = por %p137, %p138
      %p140 = scmp.ne.s32.totalorder %s132, %s135
      %p141 = scmp.eq.s32.totalorder %s24, 0
      %p142 = por %p140, %p141
      %p143 = scmp.ne.s32.totalorder %s132, %s135
      %p144 = scmp.eq.s32.totalorder %s29, 6
      %p145 = por %p143, %p144
      %p146 = scmp.ne.s32.totalorder %s135, %s136
      %p147 = scmp.eq.s32.totalorder %s29, 0
      %p148 = por %p146, %p147
      %p149 = scmp.ne.s32.totalorder %s135, %s136
      %p150 = scmp.eq.s32.totalorder %s30, 6
      %p151 = por %p149, %p150
      %p153 = scmp.ne.s32.totalorder %s136, %s152
      %p154 = scmp.eq.s32.totalorder %s30, 0
      %p155 = por %p153, %p154
      %s156 = ssub.s32 %s31, %s43
      %s157 = ssub.s32 %s32, %s39
      %s158 = sor.u32 %s156, %s157
      %p159 = scmp.eq.s32.totalorder %s158, 0
      %s161 = sadd.s32 %s160, 1
      %s162 = scalar_select %p159, %s160, %s161
      %p165 = pneg %p159
      %p166 = scmp.eq.s32.totalorder %s24, 6
      %p167 = por %p165, %p166
      %p168 = scmp.ne.s32.totalorder %s160, %s163
      %p169 = scmp.eq.s32.totalorder %s24, 0
      %p170 = por %p168, %p169
      %p171 = scmp.ne.s32.totalorder %s160, %s163
      %p172 = scmp.eq.s32.totalorder %s29, 6
      %p173 = por %p171, %p172
      %p174 = scmp.ne.s32.totalorder %s163, %s164
      %p175 = scmp.eq.s32.totalorder %s29, 0
      %p176 = por %p174, %p175
      %p177 = scmp.ne.s32.totalorder %s163, %s164
      %p178 = scmp.eq.s32.totalorder %s30, 6
      %p179 = por %p177, %p178
      %p181 = scmp.ne.s32.totalorder %s164, %s180
      %p182 = scmp.eq.s32.totalorder %s30, 0
      %p183 = por %p181, %p182
      %s184 = ssub.s32 %s31, %s43
      %s185 = ssub.s32 %s32, %s39
      %s186 = sor.u32 %s184, %s185
      %p187 = scmp.eq.s32.totalorder %s186, 0
      %s189 = sadd.s32 %s188, 1
      %s190 = scalar_select %p187, %s188, %s189
      %p193 = pneg %p187
      %p194 = scmp.eq.s32.totalorder %s24, 6
      %p195 = por %p193, %p194
      %p196 = scmp.ne.s32.totalorder %s188, %s191
      %p197 = scmp.eq.s32.totalorder %s24, 0
      %p198 = por %p196, %p197
      %p199 = scmp.ne.s32.totalorder %s188, %s191
      %p200 = scmp.eq.s32.totalorder %s29, 6
      %p201 = por %p199, %p200
      %p202 = scmp.ne.s32.totalorder %s191, %s192
      %p203 = scmp.eq.s32.totalorder %s29, 0
      %p204 = por %p202, %p203
      %p205 = scmp.ne.s32.totalorder %s191, %s192
      %p206 = scmp.eq.s32.totalorder %s30, 6
      %p207 = por %p205, %p206
      %p209 = scmp.ne.s32.totalorder %s192, %s208
      %p210 = scmp.eq.s32.totalorder %s30, 0
      %p211 = por %p209, %p210
      %p212 = scmp.le.s32.totalorder 1, %s24
      %p213 = scmp.lt.s32.totalorder %s24, 8
      %p214 = pnand %p212, %p213
      %p215 = pneg %p214
      // Predicated region
      $region9: #{tpu_custom_call.1} parent=5 // pred_check
        _
      $region10: #{tpu_custom_call.1} parent=5 // pred_check_branch
        %217 = sbr.rel (%p214) target = $region12
      $region11: #{tpu_custom_call.1} parent=5 // pred_region
        %s218 = ssub.s32 %s24, 1
      $region12: #{tpu_custom_call.1} parent=5 // pred_fallthru
        _
      %p219 = scmp.lt.s32.totalorder %s24, 7
      // Predicated region
      $region13: #{tpu_custom_call.1} parent=5 // pred_check
        %p220 = pneg %p219
      $region14: #{tpu_custom_call.1} parent=5 // pred_check_branch
        %222 = sbr.rel (%p220) target = $region16
      $region15: #{tpu_custom_call.1} parent=5 // pred_region
        // Predicated region
        $region17: #{tpu_custom_call.1} parent=15 // pred_check
          %p223 = pneg %p58
        $region18: #{tpu_custom_call.1} parent=15 // pred_check_branch
          %225 = sbr.rel (%p223) target = $region20
        $region19: #{tpu_custom_call.1} parent=15 // pred_region
          %s226 = smul.u32 4, %s31
          %s227 = smul.u32 2, %s32
          %p228 = scmp.lt.s32.totalorder %s226, 27
          %s229 = scalar_select %p228, %s226, 27
          %p230 = scmp.lt.s32.totalorder %s227, 1
          %s231 = scalar_select %p230, %s227, 1
          %s232 = smul.addr %s229, 2
          %s233 = sadd.s32 %s231, %s232
          %s234 = smul.addr %s233, 8
          %s235 = scalar_lea.vmem %s0, %s234
          %s236 = smul.u32 4, %s31
          %s237 = smul.u32 2, %s32
        $region20: #{tpu_custom_call.1} parent=15 // pred_fallthru
          _
        // Predicated region
        $region21: #{tpu_custom_call.1} parent=15 // pred_check
          %p238 = pneg %p86
        $region22: #{tpu_custom_call.1} parent=15 // pred_check_branch
          %240 = sbr.rel (%p238) target = $region24
        $region23: #{tpu_custom_call.1} parent=15 // pred_region
          %s241 = sand.u32 %s76, 1
          %s242 = scalar_lea.sflag [#allocation3], %s241
          %s243 = sand.u32 %s76, 1
          %s244 = smul.addr %s243, 64
          %s245 = scalar_lea.vmem [#allocation2], %s244
          %s246 = smul.u32 4, %s31
          %s247 = smul.u32 2, %s32
          %s249 = ssub.s32 1024, 1024
          %250 = vsyncadd %s242, %s249
          %s251 = smul.addr %s246, 2
          %s252 = sadd.s32 %s247, %s251
          %s253 = smul.addr %s252, 128
          %s254 = scalar_lea.hbm %s1, %s253
          %s255 = sshll.u32 %s245, 4
          %s256 = int_to_ptr.vmem [resolvable:$true] %s255
          %261 = dma.hbm_to_vmem [thread:$0]  %s254, 1024, %s256, %s242, 256, 256, 16
        $region24: #{tpu_custom_call.1} parent=15 // pred_fallthru
          _
        // Predicated region
        $region25: #{tpu_custom_call.1} parent=15 // pred_check
          %p262 = pneg %p114
        $region26: #{tpu_custom_call.1} parent=15 // pred_check_branch
          %264 = sbr.rel (%p262) target = $region28
        $region27: #{tpu_custom_call.1} parent=15 // pred_region
          %s265 = sand.u32 %s104, 1
          %s266 = scalar_lea.sflag [#allocation6], %s265
          %s267 = sand.u32 %s104, 1
          %s268 = smul.addr %s267, 64
          %s269 = scalar_lea.vmem [#allocation5], %s268
          %s270 = smul.u32 4, %s31
          %s271 = smul.u32 2, %s32
          %s273 = ssub.s32 1024, 1024
          %274 = vsyncadd %s266, %s273
          %s275 = smul.addr %s270, 2
          %s276 = sadd.s32 %s271, %s275
          %s277 = smul.addr %s276, 128
          %s278 = scalar_lea.hbm %s2, %s277
          %s279 = sshll.u32 %s269, 4
          %s280 = int_to_ptr.vmem [resolvable:$true] %s279
          %285 = dma.hbm_to_vmem [thread:$0]  %s278, 1024, %s280, %s266, 256, 256, 16
        $region28: #{tpu_custom_call.1} parent=15 // pred_fallthru
          _
      $region16: #{tpu_custom_call.1} parent=5 // pred_fallthru
        _
      %p286 = scmp.le.s32.totalorder 1, %s24
      %p287 = scmp.lt.s32.totalorder %s24, 8
      %p288 = pnand %p286, %p287
      %p289 = pneg %p288
      // Predicated region
      $region29: #{tpu_custom_call.1} parent=5 // pred_check
        _
      $region30: #{tpu_custom_call.1} parent=5 // pred_check_branch
        %291 = sbr.rel (%p288) target = $region32
      $region31: #{tpu_custom_call.1} parent=5 // pred_region
        %s292 = ssub.s32 %s24, 1
        %s293 = sand.u32 %s79, 1
        %s294 = scalar_lea.sflag [#allocation3], %s293
        %s295 = sand.u32 %s79, 1
        %s296 = smul.addr %s295, 64
        %s297 = scalar_lea.vmem [#allocation2], %s296
        // Predicated region
        $region33: #{tpu_custom_call.1} parent=31 // pred_check
          %p298 = pneg %p92
        $region34: #{tpu_custom_call.1} parent=31 // pred_check_branch
          %300 = sbr.rel (%p298) target = $region36
        $region35: #{tpu_custom_call.1} parent=31 // pred_region
          %301 = dma.done %s294, 1024
        $region36: #{tpu_custom_call.1} parent=31 // pred_fallthru
          _
        %s302 = sand.u32 %s107, 1
        %s303 = scalar_lea.sflag [#allocation6], %s302
        %s304 = sand.u32 %s107, 1
        %s305 = smul.addr %s304, 64
        %s306 = scalar_lea.vmem [#allocation5], %s305
        // Predicated region
        $region37: #{tpu_custom_call.1} parent=31 // pred_check
          %p307 = pneg %p120
        $region38: #{tpu_custom_call.1} parent=31 // pred_check_branch
          %309 = sbr.rel (%p307) target = $region40
        $region39: #{tpu_custom_call.1} parent=31 // pred_region
          %310 = dma.done %s303, 1024
        $region40: #{tpu_custom_call.1} parent=31 // pred_fallthru
          _
        %s311 = smul.u32 4, %s33
        %s312 = smul.u32 2, %s34
        %p313 = scmp.lt.s32.totalorder %s311, 27
        %s314 = scalar_select %p313, %s311, 27
        %p315 = scmp.lt.s32.totalorder %s312, 1
        %s316 = scalar_select %p315, %s312, 1
        %s317 = smul.addr %s314, 2
        %s318 = sadd.s32 %s316, %s317
        %s319 = smul.addr %s318, 8
        %s320 = scalar_lea.vmem %s0, %s319
        %p321 = pneg %p64
        %p322 = pneg %p61
        %s323 = sand.u32 %s79, 1
        %s324 = scalar_lea.sflag [#allocation3], %s323
        %s325 = sand.u32 %s79, 1
        %s326 = smul.addr %s325, 64
        %s327 = scalar_lea.vmem [#allocation2], %s326
        %p328 = pneg %p92
        %p329 = pneg %p89
        %s330 = sand.u32 %s107, 1
        %s331 = scalar_lea.sflag [#allocation6], %s330
        %s332 = sand.u32 %s107, 1
        %s333 = smul.addr %s332, 64
        %s334 = scalar_lea.vmem [#allocation5], %s333
        %p335 = pneg %p120
        %p336 = pneg %p117
        %p337 = pneg %p148
        %p338 = pneg %p145
        %s339 = sand.u32 %s135, 1
        %s340 = scalar_lea.sflag [#allocation4], %s339
        %s341 = sand.u32 %s135, 1
        %s342 = smul.addr %s341, 64
        %s343 = scalar_lea.vmem [#allocation7], %s342
        %p344 = pneg %p176
        %p345 = pneg %p173
        %s346 = sand.u32 %s29, 1
        %s347 = scalar_lea.sflag [#allocation9], %s346
        %s348 = sand.u32 %s163, 1
        %s349 = smul.addr %s348, 64
        %s350 = scalar_lea.vmem [#allocation8], %s349
        %p351 = pneg %p204
        %p352 = pneg %p201
        %s353 = sand.u32 %s29, 1
        %s354 = scalar_lea.sflag [#allocation9], %s353
        %s355 = sand.u32 %s191, 1
        %s356 = smul.addr %s355, 16
        %s357 = scalar_lea.vmem [#allocation10], %s356
        %s358 = smul.u32 4, %s33
        %s359 = smul.u32 2, %s34
        %p360 = scmp.lt.s32.totalorder %s358, 27
        %s361 = scalar_select %p360, %s358, 27
        %p362 = scmp.lt.s32.totalorder %s359, 1
        %s363 = scalar_select %p362, %s359, 1
        %s364 = smul.addr %s361, 2
        %s365 = sadd.s32 %s363, %s364
        %s366 = smul.addr %s365, 8
        %s367 = scalar_lea.vmem %s0, %s366
        %s368 = smul.u32 4, %s33
        %s369 = smul.u32 2, %s34
        %s370 = smul.u32 4, %s33
        %s371 = smul.u32 2, %s34
        %s372 = smul.u32 4, %s33
        %s373 = smul.u32 2, %s34
        %s374 = smul.u32 4, %s33
        %s375 = smul.u32 2, %s34
        %s376 = smul.u32 4, %s33
        %s377 = smul.u32 2, %s34
        %s378 = smul.u32 2, %s34
        %v381 = vld [vmem:[%s367] sm:$0xff]
        %v382 = vld [vmem:[%s367 + $0x8] sm:$0xff]
        %v383 = vld [vmem:[%s367 + $0x10] sm:$0xff]
        %v384 = vld [vmem:[%s367 + $0x18] sm:$0xff]
        %v385 = vld [vmem:[%s367 + $0x20] sm:$0xff]
        %v386 = vld [vmem:[%s367 + $0x28] sm:$0xff]
        %v387 = vld [vmem:[%s367 + $0x30] sm:$0xff]
        %v388 = vld [vmem:[%s367 + $0x38] sm:$0xff]
        %v389 = vld [vmem:[%s297] sm:$0xff]
        %v390 = vld [vmem:[%s297 + $0x8] sm:$0xff]
        %v391 = vld [vmem:[%s297 + $0x10] sm:$0xff]
        %v392 = vld [vmem:[%s297 + $0x18] sm:$0xff]
        %v393 = vld [vmem:[%s297 + $0x20] sm:$0xff]
        %v394 = vld [vmem:[%s297 + $0x28] sm:$0xff]
        %v395 = vld [vmem:[%s297 + $0x30] sm:$0xff]
        %v396 = vld [vmem:[%s297 + $0x38] sm:$0xff]
        %v397 = vld [vmem:[%s306] sm:$0xff]
        %v398 = vld [vmem:[%s306 + $0x8] sm:$0xff]
        %v399 = vld [vmem:[%s306 + $0x10] sm:$0xff]
        %v400 = vld [vmem:[%s306 + $0x18] sm:$0xff]
        %v401 = vld [vmem:[%s306 + $0x20] sm:$0xff]
        %v402 = vld [vmem:[%s306 + $0x28] sm:$0xff]
        %v403 = vld [vmem:[%s306 + $0x30] sm:$0xff]
        %v404 = vld [vmem:[%s306 + $0x38] sm:$0xff]
        %vm405 = vcmp.ge.f32.partialorder %v389, 30.0
        %vm406 = vcmp.ge.f32.partialorder %v390, 30.0
        %vm407 = vcmp.ge.f32.partialorder %v391, 30.0
        %vm408 = vcmp.ge.f32.partialorder %v392, 30.0
        %vm409 = vcmp.ge.f32.partialorder %v393, 30.0
        %vm410 = vcmp.ge.f32.partialorder %v394, 30.0
        %vm411 = vcmp.ge.f32.partialorder %v395, 30.0
        %vm412 = vcmp.ge.f32.partialorder %v396, 30.0
        %v413 = vsel %vm405, -65.0, %v389
        %v414 = vsel %vm406, -65.0, %v390
        %v415 = vsel %vm407, -65.0, %v391
        %v416 = vsel %vm408, -65.0, %v392
        %v417 = vsel %vm409, -65.0, %v393
        %v418 = vsel %vm410, -65.0, %v394
        %v419 = vsel %vm411, -65.0, %v395
        %v420 = vsel %vm412, -65.0, %v396
        %v421 = vadd.f32 %v397, 8.0
        %v422 = vadd.f32 %v398, 8.0
        %v423 = vadd.f32 %v399, 8.0
        %v424 = vadd.f32 %v400, 8.0
        %v425 = vadd.f32 %v401, 8.0
        %v426 = vadd.f32 %v402, 8.0
        %v427 = vadd.f32 %v403, 8.0
        %v428 = vadd.f32 %v404, 8.0
        %v429 = vsel %vm405, %v421, %v397
        %v430 = vsel %vm406, %v422, %v398
        %v431 = vsel %vm407, %v423, %v399
        %v432 = vsel %vm408, %v424, %v400
        %v433 = vsel %vm409, %v425, %v401
        %v434 = vsel %vm410, %v426, %v402
        %v435 = vsel %vm411, %v427, %v403
        %v436 = vsel %vm412, %v428, %v404
        %v437 = vmul.f32 %v413, %v413
        %v438 = vmul.f32 %v414, %v414
        %v439 = vmul.f32 %v415, %v415
        %v440 = vmul.f32 %v416, %v416
        %v441 = vmul.f32 %v417, %v417
        %v442 = vmul.f32 %v418, %v418
        %v443 = vmul.f32 %v419, %v419
        %v444 = vmul.f32 %v420, %v420
        %v445 = vmul.f32 %v437, 0.04
        %v446 = vmul.f32 %v438, 0.04
        %v447 = vmul.f32 %v439, 0.04
        %v448 = vmul.f32 %v440, 0.04
        %v449 = vmul.f32 %v441, 0.04
        %v450 = vmul.f32 %v442, 0.04
        %v451 = vmul.f32 %v443, 0.04
        %v452 = vmul.f32 %v444, 0.04
        %v453 = vadd.f32 %v413, %v445
        %v454 = vadd.f32 %v414, %v446
        %v455 = vadd.f32 %v415, %v447
        %v456 = vadd.f32 %v416, %v448
        %v457 = vadd.f32 %v417, %v449
        %v458 = vadd.f32 %v418, %v450
        %v459 = vadd.f32 %v419, %v451
        %v460 = vadd.f32 %v420, %v452
        %v461 = vmul.f32 %v413, 5.0
        %v462 = vmul.f32 %v414, 5.0
        %v463 = vmul.f32 %v415, 5.0
        %v464 = vmul.f32 %v416, 5.0
        %v465 = vmul.f32 %v417, 5.0
        %v466 = vmul.f32 %v418, 5.0
        %v467 = vmul.f32 %v419, 5.0
        %v468 = vmul.f32 %v420, 5.0
        %v469 = vadd.f32 %v453, %v461
        %v470 = vadd.f32 %v454, %v462
        %v471 = vadd.f32 %v455, %v463
        %v472 = vadd.f32 %v456, %v464
        %v473 = vadd.f32 %v457, %v465
        %v474 = vadd.f32 %v458, %v466
        %v475 = vadd.f32 %v459, %v467
        %v476 = vadd.f32 %v460, %v468
        %v477 = vadd.f32 %v469, 140.0
        %v478 = vadd.f32 %v470, 140.0
        %v479 = vadd.f32 %v471, 140.0
        %v480 = vadd.f32 %v472, 140.0
        %v481 = vadd.f32 %v473, 140.0
        %v482 = vadd.f32 %v474, 140.0
        %v483 = vadd.f32 %v475, 140.0
        %v484 = vadd.f32 %v476, 140.0
        %v485 = vsub.f32 %v477, %v429
        %v486 = vsub.f32 %v478, %v430
        %v487 = vsub.f32 %v479, %v431
        %v488 = vsub.f32 %v480, %v432
        %v489 = vsub.f32 %v481, %v433
        %v490 = vsub.f32 %v482, %v434
        %v491 = vsub.f32 %v483, %v435
        %v492 = vsub.f32 %v484, %v436
        %v493 = vadd.f32 %v485, %v381
        %v494 = vadd.f32 %v486, %v382
        %v495 = vadd.f32 %v487, %v383
        %v496 = vadd.f32 %v488, %v384
        %v497 = vadd.f32 %v489, %v385
        %v498 = vadd.f32 %v490, %v386
        %v499 = vadd.f32 %v491, %v387
        %v500 = vadd.f32 %v492, %v388
        %v501 = vmul.f32 %v493, 0.2
        %v502 = vmul.f32 %v494, 0.2
        %v503 = vmul.f32 %v495, 0.2
        %v504 = vmul.f32 %v496, 0.2
        %v505 = vmul.f32 %v497, 0.2
        %v506 = vmul.f32 %v498, 0.2
        %v507 = vmul.f32 %v499, 0.2
        %v508 = vmul.f32 %v500, 0.2
        %v509 = vsub.f32 %v501, %v429
        %v510 = vsub.f32 %v502, %v430
        %v511 = vsub.f32 %v503, %v431
        %v512 = vsub.f32 %v504, %v432
        %v513 = vsub.f32 %v505, %v433
        %v514 = vsub.f32 %v506, %v434
        %v515 = vsub.f32 %v507, %v435
        %v516 = vsub.f32 %v508, %v436
        %v517 = vmul.f32 %v509, 0.02
        %v518 = vmul.f32 %v510, 0.02
        %v519 = vmul.f32 %v511, 0.02
        %v520 = vmul.f32 %v512, 0.02
        %v521 = vmul.f32 %v513, 0.02
        %v522 = vmul.f32 %v514, 0.02
        %v523 = vmul.f32 %v515, 0.02
        %v524 = vmul.f32 %v516, 0.02
        %v525 = vadd.f32 %v429, %v517
        %v526 = vadd.f32 %v430, %v518
        %v527 = vadd.f32 %v431, %v519
        %v528 = vadd.f32 %v432, %v520
        %v529 = vadd.f32 %v433, %v521
        %v530 = vadd.f32 %v434, %v522
        %v531 = vadd.f32 %v435, %v523
        %v532 = vadd.f32 %v436, %v524
        %vm533 = vmpackc.low %vm407, %vm405
        %vm534 = vmpackc.low %vm411, %vm409
        %vm535 = vmpackc.even %vm534, %vm533
        %vm536 = vmpackc.low %vm408, %vm406
        %vm537 = vmpackc.low %vm412, %vm410
        %vm538 = vmpackc.even %vm537, %vm536
        %v539 = vsel %vm535, 16843009, 0
        %v540 = vsel %vm538, 16843009, 0
        %541 = vst [vmem:[%s357] sm:$0xff] %v539
        %542 = vst [vmem:[%s357 + $0x8] sm:$0xff] %v540
        %543 = vst [vmem:[%s343] sm:$0xff] %v493
        %544 = vst [vmem:[%s343 + $0x8] sm:$0xff] %v494
        %545 = vst [vmem:[%s343 + $0x10] sm:$0xff] %v495
        %546 = vst [vmem:[%s343 + $0x18] sm:$0xff] %v496
        %547 = vst [vmem:[%s343 + $0x20] sm:$0xff] %v497
        %548 = vst [vmem:[%s343 + $0x28] sm:$0xff] %v498
        %549 = vst [vmem:[%s343 + $0x30] sm:$0xff] %v499
        %550 = vst [vmem:[%s343 + $0x38] sm:$0xff] %v500
        %551 = vst [vmem:[%s350] sm:$0xff] %v525
        %552 = vst [vmem:[%s350 + $0x8] sm:$0xff] %v526
        %553 = vst [vmem:[%s350 + $0x10] sm:$0xff] %v527
        %554 = vst [vmem:[%s350 + $0x18] sm:$0xff] %v528
        %555 = vst [vmem:[%s350 + $0x20] sm:$0xff] %v529
        %556 = vst [vmem:[%s350 + $0x28] sm:$0xff] %v530
        %557 = vst [vmem:[%s350 + $0x30] sm:$0xff] %v531
        %558 = vst [vmem:[%s350 + $0x38] sm:$0xff] %v532
        %s559 = sand.u32 %s135, 1
        %s560 = scalar_lea.sflag [#allocation4], %s559
        %s561 = sand.u32 %s135, 1
        %s562 = smul.addr %s561, 64
        %s563 = scalar_lea.vmem [#allocation7], %s562
        %s564 = sand.u32 %s29, 1
        %s565 = scalar_lea.sflag [#allocation9], %s564
        %s566 = sand.u32 %s163, 1
        %s567 = smul.addr %s566, 64
        %s568 = scalar_lea.vmem [#allocation8], %s567
        %s569 = sand.u32 %s29, 1
        %s570 = scalar_lea.sflag [#allocation9], %s569
        %s571 = sand.u32 %s191, 1
        %s572 = smul.addr %s571, 16
        %s573 = scalar_lea.vmem [#allocation10], %s572
        // Predicated region
        $region41: #{tpu_custom_call.1} parent=31 // pred_check
          %p574 = pneg %p145
        $region42: #{tpu_custom_call.1} parent=31 // pred_check_branch
          %576 = sbr.rel (%p574) target = $region44
        $region43: #{tpu_custom_call.1} parent=31 // pred_region
          %s577 = smul.u32 4, %s33
          %s578 = smul.u32 2, %s34
          %s580 = ssub.s32 1024, 1024
          %581 = vsyncadd %s560, %s580
          %s582 = smul.addr %s577, 2
          %s583 = sadd.s32 %s578, %s582
          %s584 = smul.addr %s583, 128
          %s585 = scalar_lea.hbm %s3, %s584
          %s586 = sshll.u32 %s563, 4
          %s587 = int_to_ptr.vmem [resolvable:$true] %s586
          %592 = dma.vmem_to_hbm [thread:$0]  %s587, 1024, %s585, %s560, 256, 256, 16
        $region44: #{tpu_custom_call.1} parent=31 // pred_fallthru
          _
        // Predicated region
        $region45: #{tpu_custom_call.1} parent=31 // pred_check
          %p593 = pneg %p173
        $region46: #{tpu_custom_call.1} parent=31 // pred_check_branch
          %595 = sbr.rel (%p593) target = $region48
        $region47: #{tpu_custom_call.1} parent=31 // pred_region
          %s596 = smul.u32 4, %s33
          %s597 = smul.u32 2, %s34
          %s599 = ssub.s32 1024, 1024
          %600 = vsyncadd %s565, %s599
          %s601 = smul.addr %s596, 2
          %s602 = sadd.s32 %s597, %s601
          %s603 = smul.addr %s602, 128
          %s604 = scalar_lea.hbm %s4, %s603
          %s605 = sshll.u32 %s568, 4
          %s606 = int_to_ptr.vmem [resolvable:$true] %s605
          %611 = dma.vmem_to_hbm [thread:$0]  %s606, 1024, %s604, %s565, 256, 256, 16
        $region48: #{tpu_custom_call.1} parent=31 // pred_fallthru
          _
        // Predicated region
        $region49: #{tpu_custom_call.1} parent=31 // pred_check
          %p612 = pneg %p201
        $region50: #{tpu_custom_call.1} parent=31 // pred_check_branch
          %614 = sbr.rel (%p612) target = $region52
        $region51: #{tpu_custom_call.1} parent=31 // pred_region
          %s615 = smul.u32 2, %s34
          %s617 = ssub.s32 256, 256
          %618 = vsyncadd %s570, %s617
          %s619 = smul.addr %s33, 2
          %s620 = sadd.s32 %s615, %s619
          %s621 = smul.addr %s620, 128
          %s622 = scalar_lea.hbm %s5, %s621
          %s624 = sshll.u32 %s573, 4
          %s625 = int_to_ptr.vmem [resolvable:$true] %s624
          %627 = dma.vmem_to_hbm [thread:$0]  %s625, 256, %s622, %s570
        $region52: #{tpu_custom_call.1} parent=31 // pred_fallthru
          _
      $region32: #{tpu_custom_call.1} parent=5 // pred_fallthru
        _
      %p628 = scmp.le.s32.totalorder 2, %s24
      // Predicated region
      $region53: #{tpu_custom_call.1} parent=5 // pred_check
        %p629 = pneg %p628
      $region54: #{tpu_custom_call.1} parent=5 // pred_check_branch
        %631 = sbr.rel (%p629) target = $region56
      $region55: #{tpu_custom_call.1} parent=5 // pred_region
        %s632 = ssub.s32 %s24, 2
        // Predicated region
        $region57: #{tpu_custom_call.1} parent=55 // pred_check
          %p633 = pneg %p151
        $region58: #{tpu_custom_call.1} parent=55 // pred_check_branch
          %635 = sbr.rel (%p633) target = $region60
        $region59: #{tpu_custom_call.1} parent=55 // pred_region
          %s636 = sand.u32 %s136, 1
          %s637 = scalar_lea.sflag [#allocation4], %s636
          %s638 = sand.u32 %s136, 1
          %s639 = smul.addr %s638, 64
          %s640 = scalar_lea.vmem [#allocation7], %s639
          %641 = dma.done %s637, 1024
        $region60: #{tpu_custom_call.1} parent=55 // pred_fallthru
          _
        // Predicated region
        $region61: #{tpu_custom_call.1} parent=55 // pred_check
          %p642 = pneg %p179
        $region62: #{tpu_custom_call.1} parent=55 // pred_check_branch
          %644 = sbr.rel (%p642) target = $region64
        $region63: #{tpu_custom_call.1} parent=55 // pred_region
          %s645 = sand.u32 %s30, 1
          %s646 = scalar_lea.sflag [#allocation9], %s645
          %s647 = sand.u32 %s164, 1
          %s648 = smul.addr %s647, 64
          %s649 = scalar_lea.vmem [#allocation8], %s648
          %650 = dma.done %s646, 1024
        $region64: #{tpu_custom_call.1} parent=55 // pred_fallthru
          _
        // Predicated region
        $region65: #{tpu_custom_call.1} parent=55 // pred_check
          %p651 = pneg %p207
        $region66: #{tpu_custom_call.1} parent=55 // pred_check_branch
          %653 = sbr.rel (%p651) target = $region68
        $region67: #{tpu_custom_call.1} parent=55 // pred_region
          %s654 = sand.u32 %s30, 1
          %s655 = scalar_lea.sflag [#allocation9], %s654
          %s656 = sand.u32 %s192, 1
          %s657 = smul.addr %s656, 16
          %s658 = scalar_lea.vmem [#allocation10], %s657
          %659 = dma.done %s655, 256
        $region68: #{tpu_custom_call.1} parent=55 // pred_fallthru
          _
      $region56: #{tpu_custom_call.1} parent=5 // pred_fallthru
        _
    $region6: #{tpu_custom_call.1} parent=1 // loop_footer
      %s28 = sadd.s32 1, %s24
    $region7: #{tpu_custom_call.1} parent=1 // loop_footer_branch
      %23 = sbr.rel target = $region3
    $region8: #{tpu_custom_call.1} parent=1 // loop_exit
      _
    %660 = vsyncpa [#allocation3], 1
    %s661 = scalar_lea.sflag [#allocation3], 1
    %662 = vsyncpa %s661, 1
    %663 = vsyncpa [#allocation6], 1
    %s664 = scalar_lea.sflag [#allocation6], 1
    %665 = vsyncpa %s664, 1
    %666 = vsyncpa [#allocation4], 1
    %s667 = scalar_lea.sflag [#allocation4], 1
    %668 = vsyncpa %s667, 1
    %669 = vsyncpa [#allocation9], 1
    %s670 = scalar_lea.sflag [#allocation9], 1
    %671 = vsyncpa %s670, 1

</llo_original>
